<compile_context>
chip_gen: v5e
topology: v5e:2x2
jax: 0.10.0
libtpu: 0.0.40
codegen_flags: <defaults>
</compile_context>

<pallas_src>
import functools
import math

import jax
import jax.numpy as jnp
from jax.experimental import pallas as pl
from jax.experimental.pallas import tpu as pltpu


# ----------------------------- helpers ------------------------------------

def calc_diffusion_step_embedding(diffusion_steps, dim_in):
    """(B, 1) steps -> (B, dim_in) sinusoidal embedding (tiny plain-JAX glue)."""
    half = dim_in // 2
    k = jnp.exp(jnp.arange(half, dtype=jnp.float32)
                * -(math.log(10000.0) / (half - 1)))
    e = diffusion_steps.astype(jnp.float32) * k[None, :]
    return jnp.concatenate([jnp.sin(e), jnp.cos(e)], axis=1)


# --------------------------- Pallas kernels --------------------------------

def embed_mlp_kernel(e_ref, w1_ref, b1_ref, w2_ref, b2_ref, wt_ref, bt_ref,
                     out_ref, *, num_layers):
    """part_t for ALL layers, emitted layer-major as (num_layers, B, C)."""
    h = jnp.dot(e_ref[...], w1_ref[...],
                preferred_element_type=jnp.float32) + b1_ref[...]
    h = h * jax.nn.sigmoid(h)                         # swish
    h = jnp.dot(h, w2_ref[...],
                preferred_element_type=jnp.float32) + b2_ref[...]
    h = h * jax.nn.sigmoid(h)                         # swish
    for i in range(num_layers):                       # unrolled tiny matmuls
        pt = jnp.dot(h, wt_ref[i],
                     preferred_element_type=jnp.float32) + bt_ref[i]
        out_ref[i] = pt.astype(out_ref.dtype)


def fused_residual_kernel(dil_ref,                 # SMEM (NL,) scalar prefetch
                          part_t_ref,              # (NL, B, C) f32, resident
                          x_ref,                   # (1, B, W, C) f32, per tile
                          cond_ref,                # (B, Lt, Ccond) bf16, per tile
                          w_ref,                   # (NL, 3C+Ccond, 2C) bf16, resident
                          b_ref,                   # (NL, 1, 2C) f32, resident
                          ws_ref,                  # (NL, C, S_pad) bf16, resident
                          bs_ref,                  # (NL, 1, S_pad) f32, resident
                          skip_ref,                # (B, Lt, S_pad) f32 accumulator
                          h_scr,                   # VMEM (B, W, C) bf16 scratch
                          *, seq_len, l_tile, halo, res_channels):
    t = pl.program_id(0)
    n = pl.program_id(1)
    C = res_channels
    B = x_ref.shape[1]
    W = x_ref.shape[2]
    d = dil_ref[n]                                  # this layer's dilation

    # h = x + part_t over the halo'd window; zero anything outside [0, L)
    part_t = part_t_ref[n]                          # (B, C)
    pos = (t * l_tile - halo
           + jax.lax.broadcasted_iota(jnp.int32, (B, W, C), 1))
    valid = (pos >= 0) & (pos < seq_len)
    h = jnp.where(valid, x_ref[0] + part_t[:, None, :], 0.0)
    h_scr[...] = h.astype(h_scr.dtype)              # bf16 window scratch

    # dilated taps: dynamic sublane-offset slices of the halo window
    center = h_scr[:, halo:halo + l_tile, :]
    left = h_scr[:, pl.ds(halo - d, l_tile), :]     # h[l - d]
    right = h_scr[:, pl.ds(halo + d, l_tile), :]    # h[l + d]

    # single fused MXU matmul: [h(l-d), h(l), h(l+d), cond] @ [wd0;wd1;wd2;wc]
    xc = jnp.concatenate([left, center, right, cond_ref[...]], axis=-1)
    K = xc.shape[-1]
    h2 = jnp.dot(xc.reshape(B * l_tile, K), w_ref[n],
                 preferred_element_type=jnp.float32)
    h2 = h2.reshape(B, l_tile, 2 * C) + b_ref[n]    # fused bd + bc

    # gated activation (kept f32: v5e has no bf16 EUP/VPU)
    # TODO(synk): on v6e/v7x cast the tanh/sigmoid inputs to bf16 (faster EUP).
    gate = jnp.tanh(h2[:, :, :C]) * jax.nn.sigmoid(h2[:, :, C:])

    # skip conv, lane-padded to 128 outputs (sqrt(1/NL) folded into ws/bs)
    skip = jnp.dot(gate.reshape(B * l_tile, C).astype(jnp.bfloat16), ws_ref[n],
                   preferred_element_type=jnp.float32)
    skip = skip.reshape(B, l_tile, -1) + bs_ref[n]

    # accumulate in the resident output block across the inner layer axis
    @pl.when(n == 0)
    def _():
        skip_ref[...] = skip.astype(skip_ref.dtype)

    @pl.when(n != 0)
    def _():
        skip_ref[...] += skip.astype(skip_ref.dtype)


# ------------------------------ wrapper -------------------------------------

def residual_group_forward(params, noise_ncl, cond_ncl, diffusion_steps, *,
                           l_tile=None):
    blocks = params["blocks"]
    num_layers = len(blocks)
    cycle = params["dilation_cycle"]
    B, C, L = noise_ncl.shape
    Ccond = cond_ncl.shape[1]
    S = blocks[0]["ws"].shape[1]
    halo = 2 ** (cycle - 1)                           # max dilation

    if l_tile is None:
        # v5e/v6e: pick 4-8k here; v7x (64 MiB VMEM): keep ~1-2k.
        l_tile = L if (L <= 1024 or L % 8 != 0) else 1024
    num_tiles = -(-L // l_tile)
    L_total = num_tiles * l_tile
    assert num_tiles == 1 or l_tile % 8 == 0, "l_tile must be a multiple of 8"
    W = l_tile + 2 * halo
    S_pad = ((S + 127) // 128) * 128                  # lane-dense skip output

    x = jnp.transpose(noise_ncl, (0, 2, 1)).astype(jnp.float32)      # (B, L, C)
    cond = jnp.transpose(cond_ncl, (0, 2, 1)).astype(jnp.float32)    # (B, L, Ccond)

    # halo'd, zero-padded overlapping windows of x (one-time XLA slicing)
    # TODO(synk): at real DiffWave L (~16k) replace with a manual halo DMA from
    # a single padded HBM copy of x to avoid duplicating the overlap in HBM.
    x_pad = jnp.pad(x, ((0, 0), (halo, L_total - L + halo), (0, 0)))
    x_win = jnp.stack(
        [jax.lax.dynamic_slice_in_dim(x_pad, t * l_tile, W, axis=1)
         for t in range(num_tiles)], axis=0)                          # (T, B, W, C)
    cond_pad = jnp.pad(cond, ((0, 0), (0, L_total - L), (0, 0))
                       ).astype(jnp.bfloat16)                         # (B, L_total, Ccond)

    # ---- stack / fuse weights (once; constant-folded under jit) ----
    inv_sqrt = math.sqrt(1.0 / num_layers)
    wt_all = jnp.stack([bp["wt"] for bp in blocks], axis=0)           # (NL, dim_out, C)
    bt_all = jnp.stack([bp["bt"] for bp in blocks], axis=0)           # (NL, 1, C)
    w_fused = jnp.stack(
        [jnp.concatenate([bp["wd0"], bp["wd1"], bp["wd2"], bp["wc"]], axis=0)
         for bp in blocks], axis=0).astype(jnp.bfloat16)              # (NL, 3C+Ccond, 2C)
    b_fused = jnp.stack([bp["bd"] + bp["bc"] for bp in blocks], axis=0)  # (NL, 1, 2C)
    ws_all = jnp.pad(jnp.stack([bp["ws"] for bp in blocks], axis=0) * inv_sqrt,
                     ((0, 0), (0, 0), (0, S_pad - S))).astype(jnp.bfloat16)
    bs_all = jnp.pad(jnp.stack([bp["bs"] for bp in blocks], axis=0) * inv_sqrt,
                     ((0, 0), (0, 0), (0, S_pad - S)))                # (NL, 1, S_pad)
    dil_tbl = jnp.array([2 ** (i % cycle) for i in range(num_layers)],
                        dtype=jnp.int32)

    # ---- embed MLP + all layers' fc_t projections in one tiny kernel ----
    emb0 = calc_diffusion_step_embedding(diffusion_steps, params["w1"].shape[0])
    part_t_all = pl.pallas_call(
        functools.partial(embed_mlp_kernel, num_layers=num_layers),
        out_shape=jax.ShapeDtypeStruct((num_layers, B, C), jnp.float32),
        in_specs=[pl.BlockSpec(memory_space=pltpu.MemorySpace.VMEM)] * 7,
        out_specs=pl.BlockSpec(memory_space=pltpu.MemorySpace.VMEM),
    )(emb0, params["w1"], params["b1"], params["w2"], params["b2"],
      wt_all, bt_all)

    # ---- fused residual group: grid = (L tiles, layers) ----
    kern = functools.partial(fused_residual_kernel, seq_len=L, l_tile=l_tile,
                             halo=halo, res_channels=C)
    skip = pl.pallas_call(
        kern,
        out_shape=jax.ShapeDtypeStruct((B, L_total, S_pad), jnp.float32),
        grid_spec=pltpu.PrefetchScalarGridSpec(
            num_scalar_prefetch=1,                    # dilation table -> SMEM
            grid=(num_tiles, num_layers),             # layer axis innermost
            in_specs=[
                pl.BlockSpec((num_layers, B, C), lambda t, n, dil: (0, 0, 0)),
                pl.BlockSpec((1, B, W, C), lambda t, n, dil: (t, 0, 0, 0)),
                pl.BlockSpec((B, l_tile, Ccond), lambda t, n, dil: (0, t, 0)),
                pl.BlockSpec((num_layers, 3 * C + Ccond, 2 * C),
                             lambda t, n, dil: (0, 0, 0)),
                pl.BlockSpec((num_layers, 1, 2 * C), lambda t, n, dil: (0, 0, 0)),
                pl.BlockSpec((num_layers, C, S_pad), lambda t, n, dil: (0, 0, 0)),
                pl.BlockSpec((num_layers, 1, S_pad), lambda t, n, dil: (0, 0, 0)),
            ],
            out_specs=pl.BlockSpec((B, l_tile, S_pad),
                                   lambda t, n, dil: (0, t, 0)),
            scratch_shapes=[pltpu.VMEM((B, W, C), jnp.bfloat16)],
        ),
        compiler_params=pltpu.CompilerParams(
            dimension_semantics=("parallel", "arbitrary"),
            # v5e/v6e can raise this toward ~112 MiB for bigger L tiles.
            vmem_limit_bytes=64 * 1024 * 1024),
    )(dil_tbl, part_t_all, x_win, cond_pad, w_fused, b_fused, ws_all, bs_all)

    return jnp.transpose(skip[:, :L, :S], (0, 2, 1))                  # (B, S, L)


# --------------------- deterministic parameter init -------------------------

def init_params(key, *, res_channels, skip_channels, num_res_layers,
                dilation_cycle, dim_in, dim_mid, dim_out, in_channels):
    def dense(k, shape, fan_in):
        return jax.random.normal(k, shape, jnp.float32) / math.sqrt(fan_in)

    keys = iter(jax.random.split(key, 4 + 10 * num_res_layers))
    C, S = res_channels, skip_channels
    p = {
        "dilation_cycle": dilation_cycle,
        "w1": dense(next(keys), (dim_in, dim_mid), dim_in),
        "b1": dense(next(keys), (1, dim_mid), dim_in),
        "w2": dense(next(keys), (dim_mid, dim_out), dim_mid),
        "b2": dense(next(keys), (1, dim_out), dim_mid),
        "blocks": [],
    }
    for n in range(num_res_layers):
        p["blocks"].append({
            "dilation": 2 ** (n % dilation_cycle),
            # fc_t : Linear(dim_out -> C)
            "wt": dense(next(keys), (dim_out, C), dim_out),
            "bt": dense(next(keys), (1, C), dim_out),
            # dilated conv : Conv1d(C -> 2C, k=3); wd_j == weight[:, :, j].T
            "wd0": dense(next(keys), (C, 2 * C), 3 * C),
            "wd1": dense(next(keys), (C, 2 * C), 3 * C),
            "wd2": dense(next(keys), (C, 2 * C), 3 * C),
            "bd": dense(next(keys), (1, 2 * C), 3 * C),
            # cond conv : Conv1d(2*in_channels -> 2C, k=1)
            "wc": dense(next(keys), (2 * in_channels, 2 * C), 2 * in_channels),
            "bc": dense(next(keys), (1, 2 * C), 2 * in_channels),
            # skip conv : Conv1d(C -> S, k=1)
            "ws": dense(next(keys), (C, S), C),
            "bs": dense(next(keys), (1, S), C),
        })
    return p


# ------------------------ pure-JAX reference (check) ------------------------

def reference_forward(params, noise_ncl, cond_ncl, diffusion_steps):
    x = jnp.transpose(noise_ncl, (0, 2, 1)).astype(jnp.float32)
    cond = jnp.transpose(cond_ncl, (0, 2, 1)).astype(jnp.float32)
    B, L, C = x.shape

    def swish(v):
        return v * jax.nn.sigmoid(v)

    e = calc_diffusion_step_embedding(diffusion_steps, params["w1"].shape[0])
    e = swish(e @ params["w1"] + params["b1"])
    e = swish(e @ params["w2"] + params["b2"])

    skip_sum = 0.0
    for bp in params["blocks"]:
        d = bp["dilation"]
        part_t = e @ bp["wt"] + bp["bt"]
        h = x + part_t[:, None, :]
        hp = jnp.pad(h, ((0, 0), (d, d), (0, 0)))
        h2 = (hp[:, 0:L] @ bp["wd0"] + hp[:, d:d + L] @ bp["wd1"]
              + hp[:, 2 * d:2 * d + L] @ bp["wd2"] + bp["bd"][None])
        h2 = h2 + cond @ bp["wc"] + bp["bc"][None]
        gate = jnp.tanh(h2[..., :C]) * jax.nn.sigmoid(h2[..., C:])
        skip_sum = skip_sum + gate @ bp["ws"] + bp["bs"][None]
    skip_sum = skip_sum * math.sqrt(1.0 / len(params["blocks"]))
    return jnp.transpose(skip_sum, (0, 2, 1))


# --------------------------------- main -------------------------------------

if __name__ == "__main__":
    B = 2
    res_channels = 8
    skip_channels = 8
    in_channels = 4          # conditional has 2*in_channels channels
    L = 16
    num_res_layers = 3
    dilation_cycle = 2
    dim_in, dim_mid, dim_out = 16, 32, 32

    key = jax.random.PRNGKey(0)
    kp, kn, kc, ks = jax.random.split(key, 4)
    params = init_params(kp,
                         res_channels=res_channels,
                         skip_channels=skip_channels,
                         num_res_layers=num_res_layers,
                         dilation_cycle=dilation_cycle,
                         dim_in=dim_in, dim_mid=dim_mid, dim_out=dim_out,
                         in_channels=in_channels)

    noise = jax.random.normal(kn, (B, res_channels, L), jnp.float32)
    conditional = jax.random.normal(kc, (B, 2 * in_channels, L), jnp.float32)
    diffusion_steps = jax.random.randint(ks, (B, 1), 0, 50).astype(jnp.float32)

    # l_tile=8 -> two L tiles at the demo shape, exercising the new tile axis.
    out = residual_group_forward(params, noise, conditional, diffusion_steps,
                                 l_tile=8)
    out = jax.block_until_ready(out)

    ref = reference_forward(params, noise, conditional, diffusion_steps)
    assert out.shape == (B, skip_channels, L), out.shape
    # tolerance relaxed for bf16 MXU operands (f32 accumulation retained)
    assert jnp.allclose(out, ref, atol=5e-2, rtol=5e-2), \
        float(jnp.max(jnp.abs(out - ref)))
    print("KERNEL_OK")
</pallas_src>

<mosaic_0001>
module attributes {stable_mosaic.version = 11 : i64} {
  func.func @embed_mlp_kernel(%arg0: memref<2x16xf32, #tpu.memory_space<vmem>>, %arg1: memref<16x32xf32, #tpu.memory_space<vmem>>, %arg2: memref<1x32xf32, #tpu.memory_space<vmem>>, %arg3: memref<32x32xf32, #tpu.memory_space<vmem>>, %arg4: memref<1x32xf32, #tpu.memory_space<vmem>>, %arg5: memref<3x32x8xf32, #tpu.memory_space<vmem>>, %arg6: memref<3x1x8xf32, #tpu.memory_space<vmem>>, %arg7: memref<3x2x8xf32, #tpu.memory_space<vmem>>) attributes {dimension_semantics = [], scalar_prefetch = 0 : i64, scratch_operands = 0 : i64, tpu.core_type = #tpu.core_type<tc>} {
    %c0 = arith.constant 0 : index
    %c0_0 = arith.constant 0 : index
    %0 = vector.load %arg0[%c0, %c0_0] : memref<2x16xf32, #tpu.memory_space<vmem>>, vector<2x16xf32>
    %c0_1 = arith.constant 0 : index
    %c0_2 = arith.constant 0 : index
    %1 = vector.load %arg1[%c0_1, %c0_2] : memref<16x32xf32, #tpu.memory_space<vmem>>, vector<16x32xf32>
    %cst = arith.constant dense<0.000000e+00> : vector<2x32xf32>
    %2 = tpu.matmul %0, %1, %cst {dimension_numbers = #tpu.dot_dimension_numbers<[1], [0], [0], [1], [0, 0, 1, 1], [], []>} : vector<2x16xf32>, vector<16x32xf32>, vector<2x32xf32> -> vector<2x32xf32>
    %c0_3 = arith.constant 0 : index
    %c0_4 = arith.constant 0 : index
    %3 = vector.load %arg2[%c0_3, %c0_4] : memref<1x32xf32, #tpu.memory_space<vmem>>, vector<1x32xf32>
    %4 = vector.broadcast %3 : vector<1x32xf32> to vector<2x32xf32>
    %5 = arith.addf %2, %4 : vector<2x32xf32>
    %6 = arith.negf %5 : vector<2x32xf32>
    %7 = math.exp %6 : vector<2x32xf32>
    %cst_5 = arith.constant 1.000000e+00 : f32
    %8 = vector.broadcast %cst_5 : f32 to vector<2x32xf32>
    %9 = arith.addf %8, %7 : vector<2x32xf32>
    %10 = arith.divf %8, %9 : vector<2x32xf32>
    %11 = arith.mulf %5, %10 : vector<2x32xf32>
    %c0_6 = arith.constant 0 : index
    %c0_7 = arith.constant 0 : index
    %12 = vector.load %arg3[%c0_6, %c0_7] : memref<32x32xf32, #tpu.memory_space<vmem>>, vector<32x32xf32>
    %cst_8 = arith.constant dense<0.000000e+00> : vector<2x32xf32>
    %13 = tpu.matmul %11, %12, %cst_8 {dimension_numbers = #tpu.dot_dimension_numbers<[1], [0], [0], [1], [0, 0, 1, 1], [], []>} : vector<2x32xf32>, vector<32x32xf32>, vector<2x32xf32> -> vector<2x32xf32>
    %c0_9 = arith.constant 0 : index
    %c0_10 = arith.constant 0 : index
    %14 = vector.load %arg4[%c0_9, %c0_10] : memref<1x32xf32, #tpu.memory_space<vmem>>, vector<1x32xf32>
    %15 = vector.broadcast %14 : vector<1x32xf32> to vector<2x32xf32>
    %16 = arith.addf %13, %15 : vector<2x32xf32>
    %17 = arith.negf %16 : vector<2x32xf32>
    %18 = math.exp %17 : vector<2x32xf32>
    %cst_11 = arith.constant 1.000000e+00 : f32
    %19 = vector.broadcast %cst_11 : f32 to vector<2x32xf32>
    %20 = arith.addf %19, %18 : vector<2x32xf32>
    %21 = arith.divf %19, %20 : vector<2x32xf32>
    %22 = arith.mulf %16, %21 : vector<2x32xf32>
    %c0_12 = arith.constant 0 : index
    %c0_13 = arith.constant 0 : index
    %c0_14 = arith.constant 0 : index
    %23 = vector.load %arg5[%c0_12, %c0_13, %c0_14] : memref<3x32x8xf32, #tpu.memory_space<vmem>>, vector<1x32x8xf32>
    %24 = vector.shape_cast %23 : vector<1x32x8xf32> to vector<32x8xf32>
    %cst_15 = arith.constant dense<0.000000e+00> : vector<2x8xf32>
    %25 = tpu.matmul %22, %24, %cst_15 {dimension_numbers = #tpu.dot_dimension_numbers<[1], [0], [0], [1], [0, 0, 1, 1], [], []>} : vector<2x32xf32>, vector<32x8xf32>, vector<2x8xf32> -> vector<2x8xf32>
    %c0_16 = arith.constant 0 : index
    %c0_17 = arith.constant 0 : index
    %c0_18 = arith.constant 0 : index
    %26 = vector.load %arg6[%c0_16, %c0_17, %c0_18] : memref<3x1x8xf32, #tpu.memory_space<vmem>>, vector<1x1x8xf32>
    %27 = vector.shape_cast %26 : vector<1x1x8xf32> to vector<1x8xf32>
    %28 = vector.broadcast %27 : vector<1x8xf32> to vector<2x8xf32>
    %29 = arith.addf %25, %28 : vector<2x8xf32>
    %c0_19 = arith.constant 0 : index
    %c0_20 = arith.constant 0 : index
    %c0_21 = arith.constant 0 : index
    %30 = vector.load %arg7[%c0_19, %c0_20, %c0_21] : memref<3x2x8xf32, #tpu.memory_space<vmem>>, vector<1x2x8xf32>
    %31 = vector.shape_cast %30 : vector<1x2x8xf32> to vector<2x8xf32>
    %32 = vector.shape_cast %29 : vector<2x8xf32> to vector<1x2x8xf32>
    tpu.vector_store %arg7[%c0_19, %c0_20, %c0_21], %32 {strides = array<i32>} : memref<3x2x8xf32, #tpu.memory_space<vmem>>, vector<1x2x8xf32>,
    %c1 = arith.constant 1 : index
    %c0_22 = arith.constant 0 : index
    %c0_23 = arith.constant 0 : index
    %33 = vector.load %arg5[%c1, %c0_22, %c0_23] : memref<3x32x8xf32, #tpu.memory_space<vmem>>, vector<1x32x8xf32>
    %34 = vector.shape_cast %33 : vector<1x32x8xf32> to vector<32x8xf32>
    %cst_24 = arith.constant dense<0.000000e+00> : vector<2x8xf32>
    %35 = tpu.matmul %22, %34, %cst_24 {dimension_numbers = #tpu.dot_dimension_numbers<[1], [0], [0], [1], [0, 0, 1, 1], [], []>} : vector<2x32xf32>, vector<32x8xf32>, vector<2x8xf32> -> vector<2x8xf32>
    %c1_25 = arith.constant 1 : index
    %c0_26 = arith.constant 0 : index
    %c0_27 = arith.constant 0 : index
    %36 = vector.load %arg6[%c1_25, %c0_26, %c0_27] : memref<3x1x8xf32, #tpu.memory_space<vmem>>, vector<1x1x8xf32>
    %37 = vector.shape_cast %36 : vector<1x1x8xf32> to vector<1x8xf32>
    %38 = vector.broadcast %37 : vector<1x8xf32> to vector<2x8xf32>
    %39 = arith.addf %35, %38 : vector<2x8xf32>
    %c1_28 = arith.constant 1 : index
    %c0_29 = arith.constant 0 : index
    %c0_30 = arith.constant 0 : index
    %40 = vector.load %arg7[%c1_28, %c0_29, %c0_30] : memref<3x2x8xf32, #tpu.memory_space<vmem>>, vector<1x2x8xf32>
    %41 = vector.shape_cast %40 : vector<1x2x8xf32> to vector<2x8xf32>
    %42 = vector.shape_cast %39 : vector<2x8xf32> to vector<1x2x8xf32>
    tpu.vector_store %arg7[%c1_28, %c0_29, %c0_30], %42 {strides = array<i32>} : memref<3x2x8xf32, #tpu.memory_space<vmem>>, vector<1x2x8xf32>,
    %c2 = arith.constant 2 : index
    %c0_31 = arith.constant 0 : index
    %c0_32 = arith.constant 0 : index
    %43 = vector.load %arg5[%c2, %c0_31, %c0_32] : memref<3x32x8xf32, #tpu.memory_space<vmem>>, vector<1x32x8xf32>
    %44 = vector.shape_cast %43 : vector<1x32x8xf32> to vector<32x8xf32>
    %cst_33 = arith.constant dense<0.000000e+00> : vector<2x8xf32>
    %45 = tpu.matmul %22, %44, %cst_33 {dimension_numbers = #tpu.dot_dimension_numbers<[1], [0], [0], [1], [0, 0, 1, 1], [], []>} : vector<2x32xf32>, vector<32x8xf32>, vector<2x8xf32> -> vector<2x8xf32>
    %c2_34 = arith.constant 2 : index
    %c0_35 = arith.constant 0 : index
    %c0_36 = arith.constant 0 : index
    %46 = vector.load %arg6[%c2_34, %c0_35, %c0_36] : memref<3x1x8xf32, #tpu.memory_space<vmem>>, vector<1x1x8xf32>
    %47 = vector.shape_cast %46 : vector<1x1x8xf32> to vector<1x8xf32>
    %48 = vector.broadcast %47 : vector<1x8xf32> to vector<2x8xf32>
    %49 = arith.addf %45, %48 : vector<2x8xf32>
    %c2_37 = arith.constant 2 : index
    %c0_38 = arith.constant 0 : index
    %c0_39 = arith.constant 0 : index
    %50 = vector.load %arg7[%c2_37, %c0_38, %c0_39] : memref<3x2x8xf32, #tpu.memory_space<vmem>>, vector<1x2x8xf32>
    %51 = vector.shape_cast %50 : vector<1x2x8xf32> to vector<2x8xf32>
    %52 = vector.shape_cast %49 : vector<2x8xf32> to vector<1x2x8xf32>
    tpu.vector_store %arg7[%c2_37, %c0_38, %c0_39], %52 {strides = array<i32>} : memref<3x2x8xf32, #tpu.memory_space<vmem>>, vector<1x2x8xf32>,
    return
  }
}

</mosaic_0001>

<llo_original>
// kernel: tpu_custom_call.1
$region0: #{tpu_custom_call.1}
  #allocation0 [shape = 'u32[]', space=smem, size = 0x4, offset = 0x4, fixed_abs, tag = 'smem constant byte address 0x4 - core index']
  #allocation1 [shape = 'u32[72,128]{1,0:T(1,128)}', space=vmem, size = 0x9000, scoped, tag = 'internal scratch']
  %s0 = inlined_call_operand.vmem [shape: f32[2,16], index: 0, kind: input, shape index: {}]
  %s1 = inlined_call_operand.vmem [shape: f32[16,32], index: 1, kind: input, shape index: {}]
  %s2 = inlined_call_operand.vmem [shape: f32[1,32], index: 2, kind: input, shape index: {}]
  %s3 = inlined_call_operand.vmem [shape: f32[32,32], index: 3, kind: input, shape index: {}]
  %s4 = inlined_call_operand.vmem [shape: f32[1,32], index: 4, kind: input, shape index: {}]
  %s5 = inlined_call_operand.vmem [shape: f32[3,32,8], index: 5, kind: input, shape index: {}]
  %s6 = inlined_call_operand.vmem [shape: f32[3,1,8], index: 6, kind: input, shape index: {}]
  %s7 = inlined_call_operand.hbm [shape: f32[3,2,8], index: 7, kind: output, shape index: {}]
  %s8 = sld [smem:[#allocation0]]
  $region38: #{tpu_custom_call.1} parent=0
    _
  %s10 = ssub.s32 1, %s8
  %s11 = scalar_select 0, %s10, %s8
  $region1: #{tpu_custom_call.1} parent=0
    #allocation2 [shape = 'u8[3072]{0}', space=vmem, size = 0xc00, scoped, tag = 'output window, operand 0, single buffered']
    #allocation3 [shape = 's32[1]{0}', space=sflag, size = 0x4, scoped, tag = 'scoped memory for tpu_custom_call.1']
    %12 = vsyncpa [#allocation3], 0
    // Predicated region
    $region2: #{tpu_custom_call.1} parent=1 // pred_check
      _
    $region3: #{tpu_custom_call.1} parent=1 // pred_check_branch
      %14 = sbr.rel (0) target = $region5
    $region4: #{tpu_custom_call.1} parent=1 // pred_region
      _
    $region5: #{tpu_custom_call.1} parent=1 // pred_fallthru
      _
    // Predicated region
    $region6: #{tpu_custom_call.1} parent=1 // pred_check
      _
    $region7: #{tpu_custom_call.1} parent=1 // pred_check_branch
      %16 = sbr.rel (0) target = $region9
    $region8: #{tpu_custom_call.1} parent=1 // pred_region
      _
    $region9: #{tpu_custom_call.1} parent=1 // pred_fallthru
      _
    // Predicated region
    $region10: #{tpu_custom_call.1} parent=1 // pred_check
      _
    $region11: #{tpu_custom_call.1} parent=1 // pred_check_branch
      %18 = sbr.rel (0) target = $region13
    $region12: #{tpu_custom_call.1} parent=1 // pred_region
      _
    $region13: #{tpu_custom_call.1} parent=1 // pred_fallthru
      _
    // Predicated region
    $region14: #{tpu_custom_call.1} parent=1 // pred_check
      _
    $region15: #{tpu_custom_call.1} parent=1 // pred_check_branch
      %20 = sbr.rel (0) target = $region17
    $region16: #{tpu_custom_call.1} parent=1 // pred_region
      _
    $region17: #{tpu_custom_call.1} parent=1 // pred_fallthru
      _
    // Predicated region
    $region18: #{tpu_custom_call.1} parent=1 // pred_check
      _
    $region19: #{tpu_custom_call.1} parent=1 // pred_check_branch
      %22 = sbr.rel (0) target = $region21
    $region20: #{tpu_custom_call.1} parent=1 // pred_region
      _
    $region21: #{tpu_custom_call.1} parent=1 // pred_fallthru
      _
    // Predicated region
    $region22: #{tpu_custom_call.1} parent=1 // pred_check
      _
    $region23: #{tpu_custom_call.1} parent=1 // pred_check_branch
      %24 = sbr.rel (0) target = $region25
    $region24: #{tpu_custom_call.1} parent=1 // pred_region
      _
    $region25: #{tpu_custom_call.1} parent=1 // pred_fallthru
      _
    // Predicated region
    $region26: #{tpu_custom_call.1} parent=1 // pred_check
      _
    $region27: #{tpu_custom_call.1} parent=1 // pred_check_branch
      %26 = sbr.rel (0) target = $region29
    $region28: #{tpu_custom_call.1} parent=1 // pred_region
      _
    $region29: #{tpu_custom_call.1} parent=1 // pred_fallthru
      _
    %v27 = vld [vmem:[%s0] sm:$0x3]
    %v28 = vld [vmem:[%s1] sm:$0xff]
    %v29 = vld [vmem:[%s1 + $0x8] sm:$0xff]
    %v30 = vld [vmem:[%s2] sm:$0x1]
    %v32 = vperm.slane %v30, 0
    %vm34 = vcmask 130048
    %v36 = vsel %vm34, %v27, 0
    %38 = vmatpush.msra.mxu0 0.0
    %39 = vmatpush.msra.mxu0 0.0
    %40 = vmatpush.msra.mxu0 0.0
    %41 = vmatpush.msra.mxu0 0.0
    %42 = vmatpush.msra.mxu0 0.0
    %43 = vmatpush.msra.mxu0 0.0
    %44 = vmatpush.msra.mxu0 0.0
    %45 = vmatpush.msra.mxu0 0.0
    %46 = vmatpush.msra.mxu0 0.0
    %47 = vmatpush.msra.mxu0 0.0
    %48 = vmatpush.msra.mxu0 0.0
    %49 = vmatpush.msra.mxu0 0.0
    %50 = vmatpush.msra.mxu0 0.0
    %51 = vmatpush.msra.mxu0 0.0
    %52 = vmatpush.msra.mxu0 %v29
    %53 = vmatpush.msra.mxu0 %v28
    %54 = vmatmul.f32.gmra.mxu0 %v36
    %v55 = vpop.f32.mrf.mxu0
    %v56 = vadd.f32 %v32, %v55
    %57 = vdwg.mxu0
    %v58 = vxor.u32 %v56, 2147483648
    %v59 = vmul.f32 %v58, 1.442695
    %v60 = vpow.pop %v59
    %v61 = vadd.f32 %v60, 1.0
    %v62 = vrcp.pop %v61
    %v63 = vmul.f32 %v61, %v62
    %v64 = vsub.f32 1.0, %v63
    %v65 = vmul.f32 %v62, %v64
    %v66 = vadd.f32 %v62, %v65
    %vm67 = vweird.f32 %v61
    %vm68 = vweird.f32 %v62
    %vm69 = vmor %vm67, %vm68
    %v70 = vsel %vm69, %v62, %v66
    %v71 = vand.u32 2147483647, %v61
    %vm72 = vcmp.eq.f32.partialorder %v71, 8.507059e+37
    %v73 = vand.u32 %v61, 2147483648
    %v74 = vor.u32 1.1754944e-38, %v73
    %v75 = vsel %vm72, %v74, %v70
    %v76 = vmul.f32 1.0, %v75
    %v77 = vmul.f32 %v56, %v76
    %v78 = vld [vmem:[%s3] sm:$0xff]
    %v79 = vld [vmem:[%s3 + $0x8] sm:$0xff]
    %v80 = vld [vmem:[%s3 + $0x10] sm:$0xff]
    %v81 = vld [vmem:[%s3 + $0x18] sm:$0xff]
    %v82 = vld [vmem:[%s4] sm:$0x1]
    %v84 = vperm.slane %v82, 0
    %vm86 = vcmask 261120
    %v88 = vsel %vm86, %v77, 0
    %90 = vmatpush.msra.mxu0 0.0
    %91 = vmatpush.msra.mxu0 0.0
    %92 = vmatpush.msra.mxu0 0.0
    %93 = vmatpush.msra.mxu0 0.0
    %94 = vmatpush.msra.mxu0 0.0
    %95 = vmatpush.msra.mxu0 0.0
    %96 = vmatpush.msra.mxu0 0.0
    %97 = vmatpush.msra.mxu0 0.0
    %98 = vmatpush.msra.mxu0 0.0
    %99 = vmatpush.msra.mxu0 0.0
    %100 = vmatpush.msra.mxu0 0.0
    %101 = vmatpush.msra.mxu0 0.0
    %102 = vmatpush.msra.mxu0 %v81
    %103 = vmatpush.msra.mxu0 %v80
    %104 = vmatpush.msra.mxu0 %v79
    %105 = vmatpush.msra.mxu0 %v78
    %106 = vmatmul.f32.gmra.mxu0 %v88
    %v107 = vpop.f32.mrf.mxu0
    %v108 = vadd.f32 %v84, %v107
    %109 = vdwg.mxu0
    %v110 = vxor.u32 %v108, 2147483648
    %v111 = vmul.f32 %v110, 1.442695
    %v112 = vpow.pop %v111
    %v113 = vadd.f32 %v112, 1.0
    %v114 = vrcp.pop %v113
    %v115 = vmul.f32 %v113, %v114
    %v116 = vsub.f32 1.0, %v115
    %v117 = vmul.f32 %v114, %v116
    %v118 = vadd.f32 %v114, %v117
    %vm119 = vweird.f32 %v113
    %vm120 = vweird.f32 %v114
    %vm121 = vmor %vm119, %vm120
    %v122 = vsel %vm121, %v114, %v118
    %v123 = vand.u32 2147483647, %v113
    %vm124 = vcmp.eq.f32.partialorder %v123, 8.507059e+37
    %v125 = vand.u32 %v113, 2147483648
    %v126 = vor.u32 1.1754944e-38, %v125
    %v127 = vsel %vm124, %v126, %v122
    %v128 = vmul.f32 1.0, %v127
    %v129 = vmul.f32 %v108, %v128
    %v130 = vld [vmem:[%s5] sm:$0xff]
    %v131 = vld [vmem:[%s5 + $0x8] sm:$0xff]
    %v132 = vld [vmem:[%s5 + $0x10] sm:$0xff]
    %v133 = vld [vmem:[%s5 + $0x18] sm:$0xff]
    %v134 = vld [vmem:[%s6] sm:$0x1]
    %v136 = vperm.slane %v134, 0
    %v139 = vsel %vm86, %v129, 0
    %141 = vmatpush.msra.mxu0 0.0
    %142 = vmatpush.msra.mxu0 0.0
    %143 = vmatpush.msra.mxu0 0.0
    %144 = vmatpush.msra.mxu0 0.0
    %145 = vmatpush.msra.mxu0 0.0
    %146 = vmatpush.msra.mxu0 0.0
    %147 = vmatpush.msra.mxu0 0.0
    %148 = vmatpush.msra.mxu0 0.0
    %149 = vmatpush.msra.mxu0 0.0
    %150 = vmatpush.msra.mxu0 0.0
    %151 = vmatpush.msra.mxu0 0.0
    %152 = vmatpush.msra.mxu0 0.0
    %153 = vmatpush.msra.mxu0 %v133
    %154 = vmatpush.msra.mxu0 %v132
    %155 = vmatpush.msra.mxu0 %v131
    %156 = vmatpush.msra.mxu0 %v130
    %157 = vmatmul.f32.gmra.mxu0 %v139
    %v158 = vpop.f32.mrf.mxu0
    %v159 = vadd.f32 %v136, %v158
    %160 = vdwg.mxu0
    %vm161 = vcmask 58368
    %162 = vst.msk [vmem:[#allocation2] sm:$0x3] %vm161, %v159
    %s163 = scalar_lea.vmem %s5, 32
    %v164 = vld [vmem:[%s163] sm:$0xff]
    %v165 = vld [vmem:[%s163 + $0x8] sm:$0xff]
    %v166 = vld [vmem:[%s163 + $0x10] sm:$0xff]
    %v167 = vld [vmem:[%s163 + $0x18] sm:$0xff]
    %s168 = scalar_lea.vmem %s6, 1
    %v169 = vld [vmem:[%s168] sm:$0x1]
    %v171 = vperm.slane %v169, 0
    %173 = vmatpush.msra.mxu0 0.0
    %174 = vmatpush.msra.mxu0 0.0
    %175 = vmatpush.msra.mxu0 0.0
    %176 = vmatpush.msra.mxu0 0.0
    %177 = vmatpush.msra.mxu0 0.0
    %178 = vmatpush.msra.mxu0 0.0
    %179 = vmatpush.msra.mxu0 0.0
    %180 = vmatpush.msra.mxu0 0.0
    %181 = vmatpush.msra.mxu0 0.0
    %182 = vmatpush.msra.mxu0 0.0
    %183 = vmatpush.msra.mxu0 0.0
    %184 = vmatpush.msra.mxu0 0.0
    %185 = vmatpush.msra.mxu0 %v167
    %186 = vmatpush.msra.mxu0 %v166
    %187 = vmatpush.msra.mxu0 %v165
    %188 = vmatpush.msra.mxu0 %v164
    %189 = vmatmul.f32.gmra.mxu0 %v139
    %v190 = vpop.f32.mrf.mxu0
    %v191 = vadd.f32 %v171, %v190
    %192 = vdwg.mxu0
    %s193 = scalar_lea.vmem [#allocation2], 2
    %194 = vst.msk [vmem:[%s193] sm:$0x3] %vm161, %v191
    %s195 = scalar_lea.vmem %s5, 64
    %v196 = vld [vmem:[%s195] sm:$0xff]
    %v197 = vld [vmem:[%s195 + $0x8] sm:$0xff]
    %v198 = vld [vmem:[%s195 + $0x10] sm:$0xff]
    %v199 = vld [vmem:[%s195 + $0x18] sm:$0xff]
    %s200 = scalar_lea.vmem %s6, 2
    %v201 = vld [vmem:[%s200] sm:$0x1]
    %v203 = vperm.slane %v201, 0
    %205 = vmatpush.msra.mxu0 0.0
    %206 = vmatpush.msra.mxu0 0.0
    %207 = vmatpush.msra.mxu0 0.0
    %208 = vmatpush.msra.mxu0 0.0
    %209 = vmatpush.msra.mxu0 0.0
    %210 = vmatpush.msra.mxu0 0.0
    %211 = vmatpush.msra.mxu0 0.0
    %212 = vmatpush.msra.mxu0 0.0
    %213 = vmatpush.msra.mxu0 0.0
    %214 = vmatpush.msra.mxu0 0.0
    %215 = vmatpush.msra.mxu0 0.0
    %216 = vmatpush.msra.mxu0 0.0
    %217 = vmatpush.msra.mxu0 %v199
    %218 = vmatpush.msra.mxu0 %v198
    %219 = vmatpush.msra.mxu0 %v197
    %220 = vmatpush.msra.mxu0 %v196
    %221 = vmatmul.f32.gmra.mxu0 %v139
    %v222 = vpop.f32.mrf.mxu0
    %v223 = vadd.f32 %v203, %v222
    %224 = vdwg.mxu0
    %s225 = scalar_lea.vmem [#allocation2], 4
    %226 = vst.msk [vmem:[%s225] sm:$0x3] %vm161, %v223
    // Predicated region
    $region30: #{tpu_custom_call.1} parent=1 // pred_check
      _
    $region31: #{tpu_custom_call.1} parent=1 // pred_check_branch
      %228 = sbr.rel (0) target = $region33
    $region32: #{tpu_custom_call.1} parent=1 // pred_region
      %230 = vsyncadd [#allocation3], 0
      %s231 = sshll.u32 [#allocation2], 4
      %s232 = int_to_ptr.vmem [resolvable:$true] %s231
      %s233 = sshll.u32 %s7, 4
      %s234 = int_to_ptr.hbm [resolvable:$true] %s233
      %239 = dma.vmem_to_hbm [thread:$0]  %s232, 96, %s234, [#allocation3], 32, 32, 2
    $region33: #{tpu_custom_call.1} parent=1 // pred_fallthru
      _
    // Predicated region
    $region34: #{tpu_custom_call.1} parent=1 // pred_check
      _
    $region35: #{tpu_custom_call.1} parent=1 // pred_check_branch
      %241 = sbr.rel (0) target = $region37
    $region36: #{tpu_custom_call.1} parent=1 // pred_region
      %243 = dma.done [#allocation3], 96
    $region37: #{tpu_custom_call.1} parent=1 // pred_fallthru
      _
    %244 = vsyncpa [#allocation3], 1

</llo_original>
